<compile_context>
chip_gen: v7x
topology: tpu7x:2x2x1
jax: 0.10.0
libtpu: 0.0.40
codegen_flags: <defaults>
</compile_context>

<pallas_src>
import functools
import math

import jax
import jax.numpy as jnp
from jax.experimental import pallas as pl
from jax.experimental.pallas import tpu as pltpu

_CHUNK = 256     # lanes per inner sub-chunk (keeps (41, CHUNK) f32 in vregs)
_MAX_TB = 8192   # max lanes per grid block (amortizes per-step overhead)


def _round_up(a, b):
    return ((a + b - 1) // b) * b


def _cdiv(a, b):
    return (a + b - 1) // b


def _choose_tiling(n):
    """Returns (tb, chunk, n_pad): block lanes, sub-chunk lanes, padded batch."""
    n128 = _round_up(n, 128)
    if n128 <= 128:
        return 128, 128, 128
    # At least 2 blocks so both v7x TensorCores get work; blocks capped at _MAX_TB.
    grid = max(2, _cdiv(n128, _MAX_TB))
    tb = _round_up(_cdiv(n128, grid), _CHUNK)
    return tb, min(_CHUNK, tb), grid * tb


def _mlp_loss_kernel(chunk, n_chunks,
                     n_ref,                       # scalar prefetch (SMEM): valid rows
                     x_ref, y_ref,                # (1, TB) batch-on-lanes blocks
                     w1_ref, b1_ref, w2_ref, w3_ref,
                     pred_ref, part_ref):
    """One batch block, iterated over static 256-lane sub-chunks."""
    tb = x_ref.shape[1]
    n = n_ref[0]
    block_start = pl.program_id(0) * tb

    w1 = w1_ref[...]      # (41, 1)   [W1; 0]
    b1 = b1_ref[...]      # (41, 1)   [b1; 1]   -> row 40 of h1 is always 1
    w2 = w2_ref[...]      # (41, 41)  [[W2 | b2]; e_40]  -> row 40 of h2 is always 1
    w3 = w3_ref[...]      # (1, 41)   [W3 | b3]

    acc = jnp.zeros((1, chunk), jnp.float32)     # per-lane squared-error partials

    for c in range(n_chunks):                    # static unrolled sub-chunk loop
        c0 = c * chunk
        x = x_ref[:, c0:c0 + chunk]                                        # (1, C)

        # Layer 1 (MXU, K=1) + bias + ReLU.
        h1 = jnp.maximum(
            jnp.dot(w1, x, preferred_element_type=jnp.float32) + b1, 0.0)  # (41, C)
        # Layer 2 (MXU), b2 folded via the constant-ones row of h1.
        h2 = jnp.maximum(
            jnp.dot(w2, h1, preferred_element_type=jnp.float32), 0.0)      # (41, C)
        # Layer 3 (MXU), b3 folded via the constant-ones row of h2.
        pred = jnp.dot(w3, h2, preferred_element_type=jnp.float32)         # (1, C)

        pred_ref[:, c0:c0 + chunk] = pred        # lane-dense, aligned store

        # Masked squared error (pad lanes are zero-input but pred(0) != 0, so the
        # mask is required); per-lane accumulation -> no cross-lane XLU traffic.
        lane = jax.lax.broadcasted_iota(jnp.int32, (1, chunk), 1)
        valid = (block_start + c0 + lane) < n
        diff = jnp.where(valid, y_ref[:, c0:c0 + chunk] - pred, 0.0)
        acc = acc + diff * diff

    part_ref[...] = acc.reshape(1, 1, chunk)     # lane-dense per-block partials


def prepare_params(params):
    """One-time conversion of PyTorch-layout params to the kernel-native
    bias-folded layout (features on sublanes, batch on lanes)."""
    f32 = jnp.float32
    w1 = params["W1"].astype(f32).reshape(40, 1)
    b1 = params["B1"].astype(f32).reshape(40, 1)
    w2 = params["W2"].astype(f32)
    b2 = params["B2"].astype(f32).reshape(40, 1)
    w3 = params["W3"].astype(f32).reshape(1, 40)
    b3 = params["B3"].astype(f32).reshape(1, 1)

    w1a = jnp.concatenate([w1, jnp.zeros((1, 1), f32)], axis=0)   # (41, 1)
    b1a = jnp.concatenate([b1, jnp.ones((1, 1), f32)], axis=0)    # (41, 1)
    w2_b = jnp.concatenate([w2, b2], axis=1)                      # (40, 41)
    e_row = jnp.zeros((1, 41), f32).at[0, 40].set(1.0)            # keeps ones row alive
    w2a = jnp.concatenate([w2_b, e_row], axis=0)                  # (41, 41)
    w3a = jnp.concatenate([w3, b3], axis=1)                       # (1, 41)
    return {"W1": w1a, "B1": b1a, "W2": w2a, "W3": w3a}


@jax.jit
def net_forward(x, y, kparams):
    """Reproduces Net.forward(input, output) -> (loss, pred) with a Pallas kernel."""
    n = x.shape[0]
    tb, chunk, n_pad = _choose_tiling(n)
    grid = n_pad // tb
    n_chunks = tb // chunk

    # Batch on the LANE axis, zero-padded to a multiple of the block size so all
    # blocks are full (unmasked lane-dense stores, no garbage reads).
    x_row = jnp.pad(x.astype(jnp.float32).reshape(1, n), ((0, 0), (0, n_pad - n)))
    y_row = jnp.pad(y.astype(jnp.float32).reshape(1, n), ((0, 0), (0, n_pad - n)))
    n_scalar = jnp.full((1,), n, dtype=jnp.int32)

    row_spec = pl.BlockSpec((1, tb), lambda i, n_s: (0, i))

    def full_spec(arr):
        # Whole-array, grid-invariant VMEM block (weights / biases).
        return pl.BlockSpec(arr.shape, lambda i, n_s: (0, 0))

    grid_spec = pltpu.PrefetchScalarGridSpec(
        num_scalar_prefetch=1,
        grid=(grid,),
        in_specs=[row_spec, row_spec,
                  full_spec(kparams["W1"]), full_spec(kparams["B1"]),
                  full_spec(kparams["W2"]), full_spec(kparams["W3"])],
        out_specs=(row_spec,
                   pl.BlockSpec((1, 1, chunk), lambda i, n_s: (i, 0, 0))),
    )

    pred_row, partials = pl.pallas_call(
        functools.partial(_mlp_loss_kernel, chunk, n_chunks),
        grid_spec=grid_spec,
        out_shape=(jax.ShapeDtypeStruct((1, n_pad), jnp.float32),
                   jax.ShapeDtypeStruct((grid, 1, chunk), jnp.float32)),
        compiler_params=pltpu.CompilerParams(
            dimension_semantics=("parallel",),
            vmem_limit_bytes=32 * 1024 * 1024),
    )(n_scalar, x_row, y_row,
      kparams["W1"], kparams["B1"], kparams["W2"], kparams["W3"])

    # Sum all per-block / per-lane partials BEFORE the sqrt (exact MSE-sum).
    loss = jnp.sqrt(jnp.sum(partials))
    pred = pred_row[0, :n].reshape(n, 1)
    return loss, pred


def init_params(key):
    """Deterministic init mirroring reset_parameters (kaiming_uniform_ + bias bound)."""
    k = jax.random.split(key, 6)

    def kaiming_uniform(key, shape):
        fan_in = shape[1]
        gain = math.sqrt(2.0 / (1.0 + 5.0))     # kaiming_uniform_ default a=sqrt(5)
        bound = gain * math.sqrt(3.0 / fan_in)
        return jax.random.uniform(key, shape, jnp.float32, -bound, bound)

    def bias_uniform(key, shape, fan_in):
        bound = 1.0 / math.sqrt(fan_in)
        return jax.random.uniform(key, shape, jnp.float32, -bound, bound)

    W1 = kaiming_uniform(k[0], (40, 1))
    B1 = bias_uniform(k[1], (40,), 1)
    W2 = kaiming_uniform(k[2], (40, 40))
    B2 = bias_uniform(k[3], (40,), 40)
    W3 = kaiming_uniform(k[4], (1, 40))
    B3 = bias_uniform(k[5], (1,), 40)
    return {"W1": W1, "B1": B1, "W2": W2, "B2": B2, "W3": W3, "B3": B3}


if __name__ == "__main__":
    key = jax.random.PRNGKey(0)
    kp = jax.random.fold_in(key, 123)
    params = init_params(kp)
    kparams = prepare_params(params)           # one-time layout / bias-fold prep

    def reference(x, y, p):
        h1 = jnp.maximum(x @ p["W1"].T + p["B1"], 0.0)
        h2 = jnp.maximum(h1 @ p["W2"].T + p["B2"], 0.0)
        pred = h2 @ p["W3"].T + p["B3"]
        loss = jnp.sqrt(jnp.sum((y - pred) ** 2))
        return loss, pred

    # N=8 exercises the single-block path; N=300 exercises grid=2 + padding mask.
    for n in (8, 300):
        kx, ky = jax.random.split(jax.random.fold_in(key, n))
        x = jax.random.normal(kx, (n, 1), dtype=jnp.float32)   # `input`
        y = jax.random.normal(ky, (n, 1), dtype=jnp.float32)   # `output` (target)

        loss, pred = net_forward(x, y, kparams)
        jax.block_until_ready((loss, pred))

        loss_ref, pred_ref = reference(x, y, params)
        assert pred.shape == (n, 1)
        assert jnp.allclose(pred, pred_ref, atol=1e-4, rtol=1e-4), f"pred mismatch N={n}"
        assert jnp.allclose(loss, loss_ref, atol=1e-4, rtol=1e-4), f"loss mismatch N={n}"

    print("KERNEL_OK")
</pallas_src>

<mosaic_0001>
module attributes {stable_mosaic.version = 11 : i64} {
  func.func @_mlp_loss_kernel(%arg0: i32, %arg1: memref<1xi32, #tpu.memory_space<smem>>, %arg2: memref<1x128xf32, #tpu.memory_space<vmem>>, %arg3: memref<1x128xf32, #tpu.memory_space<vmem>>, %arg4: memref<41x1xf32, #tpu.memory_space<vmem>>, %arg5: memref<41x1xf32, #tpu.memory_space<vmem>>, %arg6: memref<41x41xf32, #tpu.memory_space<vmem>>, %arg7: memref<1x41xf32, #tpu.memory_space<vmem>>, %arg8: memref<1x128xf32, #tpu.memory_space<vmem>>, %arg9: memref<1x1x128xf32, #tpu.memory_space<vmem>>) attributes {dimension_semantics = [#tpu.dimension_semantics<parallel>], iteration_bounds = array<i64: 1>, scalar_prefetch = 1 : i64, scratch_operands = 0 : i64, tpu.core_type = #tpu.core_type<tc>, window_params = [{transform_indices = @transform_0, window_bounds = array<i64: 1, 128>}, {transform_indices = @transform_1, window_bounds = array<i64: 1, 128>}, {pipeline_mode = #tpu.pipeline_mode<synchronous>, transform_indices = @transform_2, window_bounds = array<i64: 41, 1>}, {pipeline_mode = #tpu.pipeline_mode<synchronous>, transform_indices = @transform_3, window_bounds = array<i64: 41, 1>}, {pipeline_mode = #tpu.pipeline_mode<synchronous>, transform_indices = @transform_4, window_bounds = array<i64: 41, 41>}, {pipeline_mode = #tpu.pipeline_mode<synchronous>, transform_indices = @transform_5, window_bounds = array<i64: 1, 41>}, {transform_indices = @transform_6, window_bounds = array<i64: 1, 128>}, {transform_indices = @transform_7, window_bounds = array<i64: 1, 1, 128>}]} {
    %c0 = arith.constant 0 : index
    %0 = memref.load %arg1[%c0] : memref<1xi32, #tpu.memory_space<smem>>
    %c128_i32 = arith.constant 128 : i32
    %1 = arith.muli %arg0, %c128_i32 : i32
    %c0_0 = arith.constant 0 : index
    %c0_1 = arith.constant 0 : index
    %2 = vector.load %arg4[%c0_0, %c0_1] : memref<41x1xf32, #tpu.memory_space<vmem>>, vector<41x1xf32>
    %c0_2 = arith.constant 0 : index
    %c0_3 = arith.constant 0 : index
    %3 = vector.load %arg5[%c0_2, %c0_3] : memref<41x1xf32, #tpu.memory_space<vmem>>, vector<41x1xf32>
    %c0_4 = arith.constant 0 : index
    %c0_5 = arith.constant 0 : index
    %4 = vector.load %arg6[%c0_4, %c0_5] : memref<41x41xf32, #tpu.memory_space<vmem>>, vector<41x41xf32>
    %c0_6 = arith.constant 0 : index
    %c0_7 = arith.constant 0 : index
    %5 = vector.load %arg7[%c0_6, %c0_7] : memref<1x41xf32, #tpu.memory_space<vmem>>, vector<1x41xf32>
    %cst = arith.constant 0.000000e+00 : f32
    %6 = vector.broadcast %cst : f32 to vector<1x128xf32>
    %c0_8 = arith.constant 0 : index
    %c0_9 = arith.constant 0 : index
    %7 = vector.load %arg2[%c0_8, %c0_9] : memref<1x128xf32, #tpu.memory_space<vmem>>, vector<1x128xf32>
    %cst_10 = arith.constant dense<0.000000e+00> : vector<41x128xf32>
    %8 = tpu.matmul %2, %7, %cst_10 {dimension_numbers = #tpu.dot_dimension_numbers<[1], [0], [0], [1], [0, 0, 1, 1], [], []>} : vector<41x1xf32>, vector<1x128xf32>, vector<41x128xf32> -> vector<41x128xf32>
    %9 = vector.broadcast %3 : vector<41x1xf32> to vector<41x128xf32>
    %10 = arith.addf %8, %9 : vector<41x128xf32>
    %cst_11 = arith.constant 0.000000e+00 : f32
    %11 = vector.broadcast %cst_11 : f32 to vector<41x128xf32>
    %12 = arith.maximumf %10, %11 : vector<41x128xf32>
    %cst_12 = arith.constant dense<0.000000e+00> : vector<41x128xf32>
    %13 = tpu.matmul %4, %12, %cst_12 {dimension_numbers = #tpu.dot_dimension_numbers<[1], [0], [0], [1], [0, 0, 1, 1], [], []>} : vector<41x41xf32>, vector<41x128xf32>, vector<41x128xf32> -> vector<41x128xf32>
    %cst_13 = arith.constant 0.000000e+00 : f32
    %14 = vector.broadcast %cst_13 : f32 to vector<41x128xf32>
    %15 = arith.maximumf %13, %14 : vector<41x128xf32>
    %cst_14 = arith.constant dense<0.000000e+00> : vector<1x128xf32>
    %16 = tpu.matmul %5, %15, %cst_14 {dimension_numbers = #tpu.dot_dimension_numbers<[1], [0], [0], [1], [0, 0, 1, 1], [], []>} : vector<1x41xf32>, vector<41x128xf32>, vector<1x128xf32> -> vector<1x128xf32>
    %c0_15 = arith.constant 0 : index
    %c0_16 = arith.constant 0 : index
    %17 = vector.load %arg8[%c0_15, %c0_16] : memref<1x128xf32, #tpu.memory_space<vmem>>, vector<1x128xf32>
    tpu.vector_store %arg8[%c0_15, %c0_16], %16 {strides = array<i32>} : memref<1x128xf32, #tpu.memory_space<vmem>>, vector<1x128xf32>,
    %18 = tpu.iota {dimensions = array<i32: 1>} : vector<1x128xi32>
    %c0_i32 = arith.constant 0 : i32
    %19 = arith.addi %1, %c0_i32 : i32
    %20 = vector.broadcast %19 : i32 to vector<1x128xi32>
    %21 = arith.addi %20, %18 : vector<1x128xi32>
    %22 = vector.broadcast %0 : i32 to vector<1x128xi32>
    %23 = arith.cmpi slt, %21, %22 : vector<1x128xi32>
    %c0_17 = arith.constant 0 : index
    %c0_18 = arith.constant 0 : index
    %24 = vector.load %arg3[%c0_17, %c0_18] : memref<1x128xf32, #tpu.memory_space<vmem>>, vector<1x128xf32>
    %25 = arith.subf %24, %16 : vector<1x128xf32>
    %cst_19 = arith.constant 0.000000e+00 : f32
    %26 = vector.broadcast %cst_19 : f32 to vector<1x128xf32>
    %27 = arith.select %23, %25, %26 : vector<1x128xi1>, vector<1x128xf32>
    %28 = arith.mulf %27, %27 : vector<1x128xf32>
    %29 = arith.addf %6, %28 : vector<1x128xf32>
    %30 = vector.shape_cast %29 : vector<1x128xf32> to vector<1x1x128xf32>
    %c0_20 = arith.constant 0 : index
    %c0_21 = arith.constant 0 : index
    %c0_22 = arith.constant 0 : index
    %31 = vector.load %arg9[%c0_20, %c0_21, %c0_22] : memref<1x1x128xf32, #tpu.memory_space<vmem>>, vector<1x1x128xf32>
    tpu.vector_store %arg9[%c0_20, %c0_21, %c0_22], %30 {strides = array<i32>} : memref<1x1x128xf32, #tpu.memory_space<vmem>>, vector<1x1x128xf32>,
    return
  }
  func.func @transform_0(%arg0: i32, %arg1: memref<1xi32, #tpu.memory_space<smem>>) -> (i32, i32) {
    %c0_i32 = arith.constant 0 : i32
    %c0_i32_0 = arith.constant 0 : i32
    return %c0_i32, %arg0 : i32, i32
  }
  func.func @transform_1(%arg0: i32, %arg1: memref<1xi32, #tpu.memory_space<smem>>) -> (i32, i32) {
    %c0_i32 = arith.constant 0 : i32
    %c0_i32_0 = arith.constant 0 : i32
    return %c0_i32, %arg0 : i32, i32
  }
  func.func @transform_2(%arg0: i32, %arg1: memref<1xi32, #tpu.memory_space<smem>>) -> (i32, i32) {
    %c0_i32 = arith.constant 0 : i32
    %c0_i32_0 = arith.constant 0 : i32
    %c0_i32_1 = arith.constant 0 : i32
    return %c0_i32, %c0_i32_0 : i32, i32
  }
  func.func @transform_3(%arg0: i32, %arg1: memref<1xi32, #tpu.memory_space<smem>>) -> (i32, i32) {
    %c0_i32 = arith.constant 0 : i32
    %c0_i32_0 = arith.constant 0 : i32
    %c0_i32_1 = arith.constant 0 : i32
    return %c0_i32, %c0_i32_0 : i32, i32
  }
  func.func @transform_4(%arg0: i32, %arg1: memref<1xi32, #tpu.memory_space<smem>>) -> (i32, i32) {
    %c0_i32 = arith.constant 0 : i32
    %c0_i32_0 = arith.constant 0 : i32
    %c0_i32_1 = arith.constant 0 : i32
    return %c0_i32, %c0_i32_0 : i32, i32
  }
  func.func @transform_5(%arg0: i32, %arg1: memref<1xi32, #tpu.memory_space<smem>>) -> (i32, i32) {
    %c0_i32 = arith.constant 0 : i32
    %c0_i32_0 = arith.constant 0 : i32
    %c0_i32_1 = arith.constant 0 : i32
    return %c0_i32, %c0_i32_0 : i32, i32
  }
  func.func @transform_6(%arg0: i32, %arg1: memref<1xi32, #tpu.memory_space<smem>>) -> (i32, i32) {
    %c0_i32 = arith.constant 0 : i32
    %c0_i32_0 = arith.constant 0 : i32
    return %c0_i32, %arg0 : i32, i32
  }
  func.func @transform_7(%arg0: i32, %arg1: memref<1xi32, #tpu.memory_space<smem>>) -> (i32, i32, i32) {
    %c0_i32 = arith.constant 0 : i32
    %c0_i32_0 = arith.constant 0 : i32
    %c0_i32_1 = arith.constant 0 : i32
    return %arg0, %c0_i32, %c0_i32_0 : i32, i32, i32
  }
}

</mosaic_0001>

<llo_original>
// kernel: net_forward.1
$region0: #{net_forward.1}
  #allocation0 [shape = 'u32[]', space=smem, size = 0x4, offset = 0x4, fixed_abs, tag = 'smem constant byte address 0x4 - core index']
  #allocation1 [shape = 'u32[144,128]{1,0:T(1,128)}', space=vmem, size = 0x12000, scoped, tag = 'internal scratch']
  #allocation2 [shape = 's32[1]{0}', space=sflag, size = 0x4, scoped, tag = 'scoped memory for net_forward.1']
  #allocation3 [shape = 's32[1]{0:T(128)S(6)}', space=smem, size = 0x200, scoped, tag = 'prefetched SMEM operand 0']
  %s0 = inlined_call_operand.<no memory space> [shape: s32[1], index: 0, kind: input, shape index: {}]
  %s1 = inlined_call_operand.vmem [shape: f32[1,128], index: 1, kind: input, shape index: {}]
  %s2 = inlined_call_operand.vmem [shape: f32[1,128], index: 2, kind: input, shape index: {}]
  %s3 = inlined_call_operand.vmem [shape: f32[41,1], index: 3, kind: input, shape index: {}]
  %s4 = inlined_call_operand.vmem [shape: f32[41,1], index: 4, kind: input, shape index: {}]
  %s5 = inlined_call_operand.vmem [shape: f32[41,41], index: 5, kind: input, shape index: {}]
  %s6 = inlined_call_operand.vmem [shape: f32[1,41], index: 6, kind: input, shape index: {}]
  %s7 = inlined_call_operand.vmem [shape: f32[1,128], index: 7, kind: output, shape index: {0}]
  %s8 = inlined_call_operand.vmem [shape: f32[1,1,128], index: 8, kind: output, shape index: {1}]
  %9 = xla_tuple %s7, %s8
  %s10 = sld [smem:[#allocation0]]
  $region42: #{net_forward.1} parent=0
    _
  %s12 = ssub.s32 1, %s10
  %s13 = scalar_select 0, %s12, %s10
  %14 = sst [smem:[#allocation3]] %s0
  // Predicated region
  $region2: #{net_forward.1} parent=0 // pred_check
    _
  $region3: #{net_forward.1} parent=0 // pred_check_branch
    %16 = sbr.rel (0) target = $region5
  $region4: #{net_forward.1} parent=0 // pred_region
    _
  $region5: #{net_forward.1} parent=0 // pred_fallthru
    _
  // Predicated region
  $region6: #{net_forward.1} parent=0 // pred_check
    _
  $region7: #{net_forward.1} parent=0 // pred_check_branch
    %18 = sbr.rel (0) target = $region9
  $region8: #{net_forward.1} parent=0 // pred_region
    _
  $region9: #{net_forward.1} parent=0 // pred_fallthru
    _
  // Predicated region
  $region10: #{net_forward.1} parent=0 // pred_check
    _
  $region11: #{net_forward.1} parent=0 // pred_check_branch
    %20 = sbr.rel (0) target = $region13
  $region12: #{net_forward.1} parent=0 // pred_region
    _
  $region13: #{net_forward.1} parent=0 // pred_fallthru
    _
  // Predicated region
  $region14: #{net_forward.1} parent=0 // pred_check
    _
  $region15: #{net_forward.1} parent=0 // pred_check_branch
    %22 = sbr.rel (0) target = $region17
  $region16: #{net_forward.1} parent=0 // pred_region
    _
  $region17: #{net_forward.1} parent=0 // pred_fallthru
    _
  // Predicated region
  $region18: #{net_forward.1} parent=0 // pred_check
    _
  $region19: #{net_forward.1} parent=0 // pred_check_branch
    %24 = sbr.rel (0) target = $region21
  $region20: #{net_forward.1} parent=0 // pred_region
    _
  $region21: #{net_forward.1} parent=0 // pred_fallthru
    _
  // Predicated region
  $region22: #{net_forward.1} parent=0 // pred_check
    _
  $region23: #{net_forward.1} parent=0 // pred_check_branch
    %26 = sbr.rel (0) target = $region25
  $region24: #{net_forward.1} parent=0 // pred_region
    _
  $region25: #{net_forward.1} parent=0 // pred_fallthru
    _
  %s27 = sld [smem:[#allocation3]]
  %s28 = smul.u32 0, 128
  %v29 = vld [vmem:[%s3] sm:$0xff]
  %v30 = vld [vmem:[%s3 + $0x8] sm:$0xff]
  %v31 = vld [vmem:[%s3 + $0x10] sm:$0xff]
  %v32 = vld [vmem:[%s3 + $0x18] sm:$0xff]
  %v33 = vld [vmem:[%s3 + $0x20] sm:$0xff]
  %v34 = vld [vmem:[%s3 + $0x28] sm:$0x1]
  %v35 = vld [vmem:[%s4] sm:$0xff]
  %v36 = vld [vmem:[%s4 + $0x8] sm:$0xff]
  %v37 = vld [vmem:[%s4 + $0x10] sm:$0xff]
  %v38 = vld [vmem:[%s4 + $0x18] sm:$0xff]
  %v39 = vld [vmem:[%s4 + $0x20] sm:$0xff]
  %v40 = vld [vmem:[%s4 + $0x28] sm:$0x1]
  %v41 = vld [vmem:[%s5] sm:$0xff]
  %v42 = vld [vmem:[%s5 + $0x8] sm:$0xff]
  %v43 = vld [vmem:[%s5 + $0x10] sm:$0xff]
  %v44 = vld [vmem:[%s5 + $0x18] sm:$0xff]
  %v45 = vld [vmem:[%s5 + $0x20] sm:$0xff]
  %v46 = vld [vmem:[%s5 + $0x28] sm:$0x1]
  %v47 = vld [vmem:[%s6] sm:$0x1]
  %v48 = vld [vmem:[%s1] sm:$0x1]
  %50 = vset.pattern.permute.xlu0 0
  %51 = vperm.xlu0 %50, %v35
  %v52 = vpop.permute.xlu0 %51
  %55 = vset.pattern.permute.xlu0 0
  %56 = vperm.xlu0 %55, %v36
  %v57 = vpop.permute.xlu0 %56
  %60 = vset.pattern.permute.xlu0 0
  %61 = vperm.xlu0 %60, %v37
  %v62 = vpop.permute.xlu0 %61
  %65 = vset.pattern.permute.xlu0 0
  %66 = vperm.xlu0 %65, %v38
  %v67 = vpop.permute.xlu0 %66
  %70 = vset.pattern.permute.xlu0 0
  %71 = vperm.xlu0 %70, %v39
  %v72 = vpop.permute.xlu0 %71
  %75 = vset.pattern.permute.xlu0 0
  %76 = vperm.xlu0 %75, %v40
  %v77 = vpop.permute.xlu0 %76
  %vm79 = vcmask 7168
  %v81 = vsel %vm79, %v29, 0
  %v84 = vsel %vm79, %v30, 0
  %v87 = vsel %vm79, %v31, 0
  %v90 = vsel %vm79, %v32, 0
  %v93 = vsel %vm79, %v33, 0
  %v96 = vsel %vm79, %v34, 0
  %vm98 = vcmask 1040384
  %v100 = vsel %vm98, %v48, 0
  %102 = vmatprep.subr.mxu0 0.0
  %103 = vmatpush1.msra.mxu0 %v100
  %104 = vmatprep.subr.mxu0 0.0
  %105 = vmatpush1.msra.mxu0 0.0
  %106 = vmatprep.subr.mxu0 0.0
  %107 = vmatpush1.msra.mxu0 0.0
  %108 = vmatprep.subr.mxu0 0.0
  %109 = vmatpush1.msra.mxu0 0.0
  %110 = vmatprep.subr.mxu0 0.0
  %111 = vmatpush1.msra.mxu0 0.0
  %112 = vmatprep.subr.mxu0 0.0
  %113 = vmatpush1.msra.mxu0 0.0
  %114 = vmatprep.subr.mxu0 0.0
  %115 = vmatpush1.msra.mxu0 0.0
  %116 = vmatprep.subr.mxu0 0.0
  %117 = vmatpush1.msra.mxu0 0.0
  %118 = vmatprep.subr.mxu0 0.0
  %119 = vmatpush1.msra.mxu0 0.0
  %120 = vmatprep.subr.mxu0 0.0
  %121 = vmatpush1.msra.mxu0 0.0
  %122 = vmatprep.subr.mxu0 0.0
  %123 = vmatpush1.msra.mxu0 0.0
  %124 = vmatprep.subr.mxu0 0.0
  %125 = vmatpush1.msra.mxu0 0.0
  %126 = vmatprep.subr.mxu0 0.0
  %127 = vmatpush1.msra.mxu0 0.0
  %128 = vmatprep.subr.mxu0 0.0
  %129 = vmatpush1.msra.mxu0 0.0
  %130 = vmatprep.subr.mxu0 0.0
  %131 = vmatpush1.msra.mxu0 0.0
  %132 = vmatprep.subr.mxu0 0.0
  %133 = vmatpush1.msra.mxu0 0.0
  %134 = vmatprep.subr.mxu0 0.0
  %135 = vmatpush1.msra.mxu0 0.0
  %136 = vmatprep.subr.mxu0 0.0
  %137 = vmatpush1.msra.mxu0 0.0
  %138 = vmatprep.subr.mxu0 0.0
  %139 = vmatpush1.msra.mxu0 0.0
  %140 = vmatprep.subr.mxu0 0.0
  %141 = vmatpush1.msra.mxu0 0.0
  %142 = vmatprep.subr.mxu0 0.0
  %143 = vmatpush1.msra.mxu0 0.0
  %144 = vmatprep.subr.mxu0 0.0
  %145 = vmatpush1.msra.mxu0 0.0
  %146 = vmatprep.subr.mxu0 0.0
  %147 = vmatpush1.msra.mxu0 0.0
  %148 = vmatprep.subr.mxu0 0.0
  %149 = vmatpush1.msra.mxu0 0.0
  %150 = vmatprep.subr.mxu0 0.0
  %151 = vmatpush1.msra.mxu0 0.0
  %152 = vmatprep.subr.mxu0 0.0
  %153 = vmatpush1.msra.mxu0 0.0
  %154 = vmatprep.subr.mxu0 0.0
  %155 = vmatpush1.msra.mxu0 0.0
  %156 = vmatprep.subr.mxu0 0.0
  %157 = vmatpush1.msra.mxu0 0.0
  %158 = vmatprep.subr.mxu0 0.0
  %159 = vmatpush1.msra.mxu0 0.0
  %160 = vmatprep.subr.mxu0 0.0
  %161 = vmatpush1.msra.mxu0 0.0
  %162 = vmatprep.subr.mxu0 0.0
  %163 = vmatpush1.msra.mxu0 0.0
  %164 = vmatprep.subr.mxu0 0.0
  %165 = vmatpush1.msra.mxu0 0.0
  %166 = vmatprep.mubr.f32.mxu0 0.0
  %167 = vmatmul.mubr.f32.gmra.mrb[0].mxu0 %v81
  %v168 = vpop.f32.mrb[0].mxu0
  %v169 = vadd.f32 %v52, %v168
  %v170 = vpop.f32.mrb[0].mxu0
  %171 = vmatprep.mubr.f32.mxu0 0.0
  %172 = vmatmul.mubr.f32.gmra.mrb[0].mxu0 %v84
  %v173 = vpop.f32.mrb[0].mxu0
  %v174 = vadd.f32 %v57, %v173
  %v175 = vpop.f32.mrb[0].mxu0
  %176 = vmatprep.mubr.f32.mxu0 0.0
  %177 = vmatmul.mubr.f32.gmra.mrb[0].mxu0 %v87
  %v178 = vpop.f32.mrb[0].mxu0
  %v179 = vadd.f32 %v62, %v178
  %v180 = vpop.f32.mrb[0].mxu0
  %181 = vmatprep.mubr.f32.mxu0 0.0
  %182 = vmatmul.mubr.f32.gmra.mrb[0].mxu0 %v90
  %v183 = vpop.f32.mrb[0].mxu0
  %v184 = vadd.f32 %v67, %v183
  %v185 = vpop.f32.mrb[0].mxu0
  %186 = vmatprep.mubr.f32.mxu0 0.0
  %187 = vmatmul.mubr.f32.gmra.mrb[0].mxu0 %v93
  %v188 = vpop.f32.mrb[0].mxu0
  %v189 = vadd.f32 %v72, %v188
  %v190 = vpop.f32.mrb[0].mxu0
  %191 = vmatprep.mubr.f32.mxu0 0.0
  %192 = vmatmul.mubr.f32.gmra.mrb[0].mxu0 %v96
  %v193 = vpop.f32.mrb[0].mxu0
  %v194 = vadd.f32 %v77, %v193
  %v195 = vpop.f32.mrb[0].mxu0
  %196 = vdwg.mxu0
  %v197 = vmax.f32 %v169, 0.0
  %v198 = vmax.f32 %v174, 0.0
  %v199 = vmax.f32 %v179, 0.0
  %v200 = vmax.f32 %v184, 0.0
  %v201 = vmax.f32 %v189, 0.0
  %v202 = vmax.f32 %v194, 0.0
  %vm203 = vcmask 334848
  %v205 = vsel %vm203, %v41, 0
  %v208 = vsel %vm203, %v42, 0
  %v211 = vsel %vm203, %v43, 0
  %v214 = vsel %vm203, %v44, 0
  %v217 = vsel %vm203, %v45, 0
  %v220 = vsel %vm203, %v46, 0
  %v223 = vsel %vm98, %v202, 0
  %225 = vmatprep.subr.mxu0 0.0
  %226 = vmatpush1.msra.mxu0 %v197
  %227 = vmatprep.subr.mxu0 0.0
  %228 = vmatpush1.msra.mxu0 %v198
  %229 = vmatprep.subr.mxu0 0.0
  %230 = vmatpush1.msra.mxu0 %v199
  %231 = vmatprep.subr.mxu0 0.0
  %232 = vmatpush1.msra.mxu0 %v200
  %233 = vmatprep.subr.mxu0 0.0
  %234 = vmatpush1.msra.mxu0 %v201
  %235 = vmatprep.subr.mxu0 0.0
  %236 = vmatpush1.msra.mxu0 %v223
  %237 = vmatprep.subr.mxu0 0.0
  %238 = vmatpush1.msra.mxu0 0.0
  %239 = vmatprep.subr.mxu0 0.0
  %240 = vmatpush1.msra.mxu0 0.0
  %241 = vmatprep.subr.mxu0 0.0
  %242 = vmatpush1.msra.mxu0 0.0
  %243 = vmatprep.subr.mxu0 0.0
  %244 = vmatpush1.msra.mxu0 0.0
  %245 = vmatprep.subr.mxu0 0.0
  %246 = vmatpush1.msra.mxu0 0.0
  %247 = vmatprep.subr.mxu0 0.0
  %248 = vmatpush1.msra.mxu0 0.0
  %249 = vmatprep.subr.mxu0 0.0
  %250 = vmatpush1.msra.mxu0 0.0
  %251 = vmatprep.subr.mxu0 0.0
  %252 = vmatpush1.msra.mxu0 0.0
  %253 = vmatprep.subr.mxu0 0.0
  %254 = vmatpush1.msra.mxu0 0.0
  %255 = vmatprep.subr.mxu0 0.0
  %256 = vmatpush1.msra.mxu0 0.0
  %257 = vmatprep.subr.mxu0 0.0
  %258 = vmatpush1.msra.mxu0 0.0
  %259 = vmatprep.subr.mxu0 0.0
  %260 = vmatpush1.msra.mxu0 0.0
  %261 = vmatprep.subr.mxu0 0.0
  %262 = vmatpush1.msra.mxu0 0.0
  %263 = vmatprep.subr.mxu0 0.0
  %264 = vmatpush1.msra.mxu0 0.0
  %265 = vmatprep.subr.mxu0 0.0
  %266 = vmatpush1.msra.mxu0 0.0
  %267 = vmatprep.subr.mxu0 0.0
  %268 = vmatpush1.msra.mxu0 0.0
  %269 = vmatprep.subr.mxu0 0.0
  %270 = vmatpush1.msra.mxu0 0.0
  %271 = vmatprep.subr.mxu0 0.0
  %272 = vmatpush1.msra.mxu0 0.0
  %273 = vmatprep.subr.mxu0 0.0
  %274 = vmatpush1.msra.mxu0 0.0
  %275 = vmatprep.subr.mxu0 0.0
  %276 = vmatpush1.msra.mxu0 0.0
  %277 = vmatprep.subr.mxu0 0.0
  %278 = vmatpush1.msra.mxu0 0.0
  %279 = vmatprep.subr.mxu0 0.0
  %280 = vmatpush1.msra.mxu0 0.0
  %281 = vmatprep.subr.mxu0 0.0
  %282 = vmatpush1.msra.mxu0 0.0
  %283 = vmatprep.subr.mxu0 0.0
  %284 = vmatpush1.msra.mxu0 0.0
  %285 = vmatprep.subr.mxu0 0.0
  %286 = vmatpush1.msra.mxu0 0.0
  %287 = vmatprep.subr.mxu0 0.0
  %288 = vmatpush1.msra.mxu0 0.0
  %289 = vmatprep.mubr.f32.mxu0 0.0
  %290 = vmatmul.mubr.f32.gmra.mrb[0].mxu0 %v205
  %v291 = vpop.f32.mrb[0].mxu0
  %v292 = vadd.f32 0.0, %v291
  %v293 = vpop.f32.mrb[0].mxu0
  %294 = vmatprep.mubr.f32.mxu0 0.0
  %295 = vmatmul.mubr.f32.gmra.mrb[0].mxu0 %v208
  %v296 = vpop.f32.mrb[0].mxu0
  %v297 = vadd.f32 0.0, %v296
  %v298 = vpop.f32.mrb[0].mxu0
  %299 = vmatprep.mubr.f32.mxu0 0.0
  %300 = vmatmul.mubr.f32.gmra.mrb[0].mxu0 %v211
  %v301 = vpop.f32.mrb[0].mxu0
  %v302 = vadd.f32 0.0, %v301
  %v303 = vpop.f32.mrb[0].mxu0
  %304 = vmatprep.mubr.f32.mxu0 0.0
  %305 = vmatmul.mubr.f32.gmra.mrb[0].mxu0 %v214
  %v306 = vpop.f32.mrb[0].mxu0
  %v307 = vadd.f32 0.0, %v306
  %v308 = vpop.f32.mrb[0].mxu0
  %309 = vmatprep.mubr.f32.mxu0 0.0
  %310 = vmatmul.mubr.f32.gmra.mrb[0].mxu0 %v217
  %v311 = vpop.f32.mrb[0].mxu0
  %v312 = vadd.f32 0.0, %v311
  %v313 = vpop.f32.mrb[0].mxu0
  %314 = vmatprep.mubr.f32.mxu0 0.0
  %315 = vmatmul.mubr.f32.gmra.mrb[0].mxu0 %v220
  %v316 = vpop.f32.mrb[0].mxu0
  %v317 = vadd.f32 0.0, %v316
  %v318 = vpop.f32.mrb[0].mxu0
  %319 = vdwg.mxu0
  %v320 = vmax.f32 %v292, 0.0
  %v321 = vmax.f32 %v297, 0.0
  %v322 = vmax.f32 %v302, 0.0
  %v323 = vmax.f32 %v307, 0.0
  %v324 = vmax.f32 %v312, 0.0
  %v325 = vmax.f32 %v317, 0.0
  %v327 = vsel %vm203, %v47, 0
  %v330 = vsel %vm98, %v325, 0
  %332 = vmatprep.subr.mxu0 0.0
  %333 = vmatpush1.msra.mxu0 %v320
  %334 = vmatprep.subr.mxu0 0.0
  %335 = vmatpush1.msra.mxu0 %v321
  %336 = vmatprep.subr.mxu0 0.0
  %337 = vmatpush1.msra.mxu0 %v322
  %338 = vmatprep.subr.mxu0 0.0
  %339 = vmatpush1.msra.mxu0 %v323
  %340 = vmatprep.subr.mxu0 0.0
  %341 = vmatpush1.msra.mxu0 %v324
  %342 = vmatprep.subr.mxu0 0.0
  %343 = vmatpush1.msra.mxu0 %v330
  %344 = vmatprep.subr.mxu0 0.0
  %345 = vmatpush1.msra.mxu0 0.0
  %346 = vmatprep.subr.mxu0 0.0
  %347 = vmatpush1.msra.mxu0 0.0
  %348 = vmatprep.subr.mxu0 0.0
  %349 = vmatpush1.msra.mxu0 0.0
  %350 = vmatprep.subr.mxu0 0.0
  %351 = vmatpush1.msra.mxu0 0.0
  %352 = vmatprep.subr.mxu0 0.0
  %353 = vmatpush1.msra.mxu0 0.0
  %354 = vmatprep.subr.mxu0 0.0
  %355 = vmatpush1.msra.mxu0 0.0
  %356 = vmatprep.subr.mxu0 0.0
  %357 = vmatpush1.msra.mxu0 0.0
  %358 = vmatprep.subr.mxu0 0.0
  %359 = vmatpush1.msra.mxu0 0.0
  %360 = vmatprep.subr.mxu0 0.0
  %361 = vmatpush1.msra.mxu0 0.0
  %362 = vmatprep.subr.mxu0 0.0
  %363 = vmatpush1.msra.mxu0 0.0
  %364 = vmatprep.subr.mxu0 0.0
  %365 = vmatpush1.msra.mxu0 0.0
  %366 = vmatprep.subr.mxu0 0.0
  %367 = vmatpush1.msra.mxu0 0.0
  %368 = vmatprep.subr.mxu0 0.0
  %369 = vmatpush1.msra.mxu0 0.0
  %370 = vmatprep.subr.mxu0 0.0
  %371 = vmatpush1.msra.mxu0 0.0
  %372 = vmatprep.subr.mxu0 0.0
  %373 = vmatpush1.msra.mxu0 0.0
  %374 = vmatprep.subr.mxu0 0.0
  %375 = vmatpush1.msra.mxu0 0.0
  %376 = vmatprep.subr.mxu0 0.0
  %377 = vmatpush1.msra.mxu0 0.0
  %378 = vmatprep.subr.mxu0 0.0
  %379 = vmatpush1.msra.mxu0 0.0
  %380 = vmatprep.subr.mxu0 0.0
  %381 = vmatpush1.msra.mxu0 0.0
  %382 = vmatprep.subr.mxu0 0.0
  %383 = vmatpush1.msra.mxu0 0.0
  %384 = vmatprep.subr.mxu0 0.0
  %385 = vmatpush1.msra.mxu0 0.0
  %386 = vmatprep.subr.mxu0 0.0
  %387 = vmatpush1.msra.mxu0 0.0
  %388 = vmatprep.subr.mxu0 0.0
  %389 = vmatpush1.msra.mxu0 0.0
  %390 = vmatprep.subr.mxu0 0.0
  %391 = vmatpush1.msra.mxu0 0.0
  %392 = vmatprep.subr.mxu0 0.0
  %393 = vmatpush1.msra.mxu0 0.0
  %394 = vmatprep.subr.mxu0 0.0
  %395 = vmatpush1.msra.mxu0 0.0
  %396 = vmatprep.mubr.f32.mxu0 0.0
  %397 = vmatmul.mubr.f32.gmra.mrb[0].mxu0 %v327
  %v398 = vpop.f32.mrb[0].mxu0
  %v399 = vadd.f32 0.0, %v398
  %v400 = vpop.f32.mrb[0].mxu0
  %401 = vdwg.mxu0
  %402 = vst [vmem:[%s7] sm:$0x1] %v399
  %v403 = vlaneseq
  %v404 = vand.u32 %v403, 127
  %v405 = vstv %s28
  %v406 = vadd.s32 %v405, %v404
  %v407 = vstv %s27
  %vm408 = vcmp.lt.s32.totalorder %v406, %v407
  %v409 = vld [vmem:[%s2] sm:$0x1]
  %v410 = vsub.f32 %v409, %v399
  %v411 = vsel %vm408, %v410, 0.0
  %v412 = vmul.f32 %v411, %v411
  %v413 = vadd.f32 %v412, 0.0
  %414 = vst [vmem:[%s8] sm:$0x1] %v413
  // Predicated region
  $region26: #{net_forward.1} parent=0 // pred_check
    _
  $region27: #{net_forward.1} parent=0 // pred_check_branch
    %416 = sbr.rel (0) target = $region29
  $region28: #{net_forward.1} parent=0 // pred_region
    _
  $region29: #{net_forward.1} parent=0 // pred_fallthru
    _
  // Predicated region
  $region30: #{net_forward.1} parent=0 // pred_check
    _
  $region31: #{net_forward.1} parent=0 // pred_check_branch
    %418 = sbr.rel (0) target = $region33
  $region32: #{net_forward.1} parent=0 // pred_region
    _
  $region33: #{net_forward.1} parent=0 // pred_fallthru
    _
  // Predicated region
  $region34: #{net_forward.1} parent=0 // pred_check
    _
  $region35: #{net_forward.1} parent=0 // pred_check_branch
    %420 = sbr.rel (0) target = $region37
  $region36: #{net_forward.1} parent=0 // pred_region
    _
  $region37: #{net_forward.1} parent=0 // pred_fallthru
    _
  // Predicated region
  $region38: #{net_forward.1} parent=0 // pred_check
    _
  $region39: #{net_forward.1} parent=0 // pred_check_branch
    %422 = sbr.rel (0) target = $region41
  $region40: #{net_forward.1} parent=0 // pred_region
    _
  $region41: #{net_forward.1} parent=0 // pred_fallthru
    _

</llo_original>
